<compile_context>
chip_gen: v7x
topology: tpu7x:2x2x1
jax: 0.10.0
libtpu: 0.0.40
codegen_flags: <defaults>
</compile_context>

<pallas_src>
import jax
import jax.numpy as jnp
from jax.experimental import pallas as pl
from jax.experimental.pallas import tpu as pltpu


_TARGET_BLOCK_BYTES = 4 << 20   # ~4 MiB / block: good amortization on v5e/v6e/v7x.
_MIN_SPLIT_BYTES = 2 << 20      # below this, one full-extent block (1 grid step).
_MAX_LANE = 16384               # cap per-row width; wider last dims go via flatten.
_VMEM_LIMIT_BYTES = 32 << 20    # > v5e's 16 MiB scoped default, <= v7x's 64 MiB phys.


def _relu_kernel(x_ref, o_ref):
    # Pure VPU elementwise max against 0 on the whole VMEM tile.
    o_ref[...] = jnp.maximum(x_ref[...], jnp.zeros((), x_ref.dtype))


def _pick_block_rows(rows: int, lane: int, itemsize: int) -> int:
    """Choose the row-tile size (sublane dim) for the (rows, lane) slab."""
    total_bytes = rows * lane * itemsize
    if rows <= 8 or total_bytes <= _MIN_SPLIT_BYTES:
        return rows  # single full-extent block (exempt from the 8-sublane rule)

    # Sublane granule depends on dtype packing: f32 -> 8, bf16 -> 16, 8-bit -> 32.
    granule = max(8, 32 // itemsize)
    target = max(granule,
                 (_TARGET_BLOCK_BYTES // (lane * itemsize)) // granule * granule)
    # Ensure >= 2 grid steps so v7x can shard the row axis over both TCs.
    half = -(-rows // 2)
    half = -(-half // granule) * granule
    block = min(target, half)
    if block >= rows:
        return rows
    return block


def feed_forward(x: jax.Array, *, donate: bool = False) -> jax.Array:
    """FeedForward.forward(x) == ReLU(x), as a Pallas TPU kernel."""
    orig_shape = x.shape
    n = x.size
    if n == 0:
        return x

    itemsize = jnp.dtype(x.dtype).itemsize

    # --- Build a lane-dense 2-D slab with zero extra HBM traffic when possible.
    trailing_pad = 0
    last = x.shape[-1] if x.ndim >= 1 else 1
    if last % 128 == 0 and last <= _MAX_LANE:
        # Common transformer case: last dim already a lane multiple -> free view.
        lane = last
        slab = x.reshape(-1, lane)
    else:
        flat = x.reshape(-1)
        lane = None
        for cand in (512, 256, 128):
            if n % cand == 0:
                lane = cand
                break
        if lane is None:
            # Ragged total element count (rare): minimal pad; ReLU(0) = 0 is safe
            # and the padded tail is sliced away below.
            lane = 128
            trailing_pad = (-n) % lane
            flat = jnp.pad(flat, (0, trailing_pad))
        slab = flat.reshape(-1, lane)

    rows = slab.shape[0]
    block_rows = _pick_block_rows(rows, lane, itemsize)
    block_bytes = block_rows * lane * itemsize

    extra_kwargs = {}
    if donate:
        # Reuse x's HBM buffer for the output (valid only if the caller drops x).
        extra_kwargs["input_output_aliases"] = {0: 0}

    out_slab = pl.pallas_call(
        _relu_kernel,
        out_shape=jax.ShapeDtypeStruct(slab.shape, slab.dtype),
        grid_spec=pl.GridSpec(
            # Ragged final block handled by Pallas masking -> no row padding.
            grid=(pl.cdiv(rows, block_rows),),
            in_specs=[pl.BlockSpec((block_rows, lane), lambda i: (i, 0))],
            out_specs=pl.BlockSpec((block_rows, lane), lambda i: (i, 0)),
        ),
        compiler_params=pltpu.CompilerParams(
            # "parallel": v7x shards the row grid across its two TensorCores;
            # measured no-op on single-TC v5e/v6e.
            dimension_semantics=("parallel",),
            vmem_limit_bytes=max(_VMEM_LIMIT_BYTES, 4 * block_bytes + (2 << 20)),
        ),
        **extra_kwargs,
    )(slab)

    if trailing_pad:
        return out_slab.reshape(-1)[:n].reshape(orig_shape)
    return out_slab.reshape(orig_shape)


if __name__ == "__main__":
    # FeedForward(d_model=32, dropout=0.1) has no parameters (net is only ReLU).
    d_model = 32
    batch, seq = 2, 8

    key = jax.random.PRNGKey(0)
    x = jax.random.normal(key, (batch, seq, d_model), dtype=jnp.float32)

    y = feed_forward(x)
    jax.block_until_ready(y)
    assert y.shape == x.shape and y.dtype == x.dtype
    assert jnp.allclose(y, jnp.maximum(x, 0.0)), "Pallas ReLU mismatch (small shape)"

    # Aligned multi-tile path: last dim % 128 == 0 -> zero-copy slab, 2 grid steps.
    x2 = jax.random.normal(jax.random.PRNGKey(1), (2, 2000, 384), dtype=jnp.float32)
    y2 = feed_forward(x2)
    jax.block_until_ready(y2)
    assert y2.shape == x2.shape and y2.dtype == x2.dtype
    assert jnp.allclose(y2, jnp.maximum(x2, 0.0)), "Pallas ReLU mismatch (aligned tiled)"

    # Ragged total (n % 128 != 0): exercises the pad + slice fallback path.
    x3 = jax.random.normal(jax.random.PRNGKey(2), (3, 7, 5), dtype=jnp.float32)
    y3 = feed_forward(x3)
    jax.block_until_ready(y3)
    assert y3.shape == x3.shape and y3.dtype == x3.dtype
    assert jnp.allclose(y3, jnp.maximum(x3, 0.0)), "Pallas ReLU mismatch (ragged path)"

    # TODO(synk): in a real model, fuse this ReLU as an epilogue of the producing
    # matmul kernel instead of paying a standalone 2N-byte HBM round trip.
    print("KERNEL_OK")
</pallas_src>

<mosaic_0001>
module attributes {stable_mosaic.version = 11 : i64} {
  func.func @_relu_kernel(%arg0: i32, %arg1: memref<1x512xf32, #tpu.memory_space<vmem>>, %arg2: memref<1x512xf32, #tpu.memory_space<vmem>>) attributes {dimension_semantics = [#tpu.dimension_semantics<parallel>], iteration_bounds = array<i64: 1>, scalar_prefetch = 0 : i64, scratch_operands = 0 : i64, tpu.core_type = #tpu.core_type<tc>, window_params = [{transform_indices = @transform_0, window_bounds = array<i64: 1, 512>}, {transform_indices = @transform_1, window_bounds = array<i64: 1, 512>}]} {
    %c0 = arith.constant 0 : index
    %c0_0 = arith.constant 0 : index
    %0 = vector.load %arg1[%c0, %c0_0] : memref<1x512xf32, #tpu.memory_space<vmem>>, vector<1x512xf32>
    %cst = arith.constant 0.000000e+00 : f32
    %1 = vector.broadcast %cst : f32 to vector<1x512xf32>
    %2 = arith.maximumf %0, %1 : vector<1x512xf32>
    %c0_1 = arith.constant 0 : index
    %c0_2 = arith.constant 0 : index
    %3 = vector.load %arg2[%c0_1, %c0_2] : memref<1x512xf32, #tpu.memory_space<vmem>>, vector<1x512xf32>
    tpu.vector_store %arg2[%c0_1, %c0_2], %2 {strides = array<i32>} : memref<1x512xf32, #tpu.memory_space<vmem>>, vector<1x512xf32>,
    return
  }
  func.func @transform_0(%arg0: i32) -> (i32, i32) {
    %c0_i32 = arith.constant 0 : i32
    %c0_i32_0 = arith.constant 0 : i32
    return %arg0, %c0_i32 : i32, i32
  }
  func.func @transform_1(%arg0: i32) -> (i32, i32) {
    %c0_i32 = arith.constant 0 : i32
    %c0_i32_0 = arith.constant 0 : i32
    return %arg0, %c0_i32 : i32, i32
  }
}

</mosaic_0001>

<llo_original>
// kernel: tpu_custom_call.1
$region0: #{tpu_custom_call.1}
  #allocation0 [shape = 'u32[]', space=smem, size = 0x4, offset = 0x4, fixed_abs, tag = 'smem constant byte address 0x4 - core index']
  #allocation1 [shape = 'u32[144,128]{1,0:T(1,128)}', space=vmem, size = 0x12000, scoped, tag = 'internal scratch']
  %s0 = inlined_call_operand.hbm [shape: f32[1,512], index: 0, kind: input, shape index: {}]
  %s1 = inlined_call_operand.hbm [shape: f32[1,512], index: 1, kind: output, shape index: {}]
  %s2 = sld [smem:[#allocation0]]
  $region18: #{tpu_custom_call.1} parent=0
    _
  %s4 = ssub.s32 1, %s2
  %s5 = scalar_select 0, %s4, %s2
  $region1: #{tpu_custom_call.1} parent=0
    #allocation2 [shape = 'u8[2048]{0}', space=vmem, size = 0x800, scoped, tag = 'input window, operand 0, single buffered']
    #allocation3 [shape = 's32[1]{0}', space=sflag, size = 0x4, scoped, tag = 'scoped memory for tpu_custom_call.1']
    #allocation4 [shape = 's32[1]{0}', space=sflag, size = 0x4, scoped, tag = 'scoped memory for tpu_custom_call.1']
    #allocation5 [shape = 'u8[2048]{0}', space=vmem, size = 0x800, scoped, tag = 'output window, operand 0, single buffered']
    %6 = vsyncpa [#allocation3], 0
    %7 = vsyncpa [#allocation4], 0
    // Predicated region
    $region2: #{tpu_custom_call.1} parent=1 // pred_check
      _
    $region3: #{tpu_custom_call.1} parent=1 // pred_check_branch
      %9 = sbr.rel (0) target = $region5
    $region4: #{tpu_custom_call.1} parent=1 // pred_region
      %s11 = ssub.s32 64, 64
      %12 = vsyncadd [#allocation3], %s11
      %s14 = sshll.u32 [#allocation2], 4
      %s15 = int_to_ptr.vmem [resolvable:$true] %s14
      %17 = dma.hbm_to_vmem [thread:$0]  %s0, 64, %s15, [#allocation3]
    $region5: #{tpu_custom_call.1} parent=1 // pred_fallthru
      _
    // Predicated region
    $region6: #{tpu_custom_call.1} parent=1 // pred_check
      _
    $region7: #{tpu_custom_call.1} parent=1 // pred_check_branch
      %19 = sbr.rel (0) target = $region9
    $region8: #{tpu_custom_call.1} parent=1 // pred_region
      %20 = dma.done [#allocation3], 64
    $region9: #{tpu_custom_call.1} parent=1 // pred_fallthru
      _
    %v21 = vld [vmem:[#allocation2] sm:$0xf]
    %v22 = vmax.f32 %v21, 0.0
    %v23 = vlaneseq
    %vm24 = vcmp.ge.s32.totalorder %v23, 0
    %vm25 = vcmp.lt.s32.totalorder %v23, 512
    %vm26 = vmand %vm24, %vm25
    %27 = vst.msk [vmem:[#allocation5] sm:$0xf] %vm26, %v22
    // Predicated region
    $region10: #{tpu_custom_call.1} parent=1 // pred_check
      _
    $region11: #{tpu_custom_call.1} parent=1 // pred_check_branch
      %29 = sbr.rel (0) target = $region13
    $region12: #{tpu_custom_call.1} parent=1 // pred_region
      %s31 = ssub.s32 64, 64
      %32 = vsyncadd [#allocation4], %s31
      %s34 = sshll.u32 [#allocation5], 4
      %s35 = int_to_ptr.vmem [resolvable:$true] %s34
      %37 = dma.vmem_to_hbm [thread:$0]  %s35, 64, %s1, [#allocation4]
    $region13: #{tpu_custom_call.1} parent=1 // pred_fallthru
      _
    // Predicated region
    $region14: #{tpu_custom_call.1} parent=1 // pred_check
      _
    $region15: #{tpu_custom_call.1} parent=1 // pred_check_branch
      %39 = sbr.rel (0) target = $region17
    $region16: #{tpu_custom_call.1} parent=1 // pred_region
      %40 = dma.done [#allocation4], 64
    $region17: #{tpu_custom_call.1} parent=1 // pred_fallthru
      _
    %41 = vsyncpa [#allocation3], 1
    %42 = vsyncpa [#allocation4], 1

</llo_original>
